<compile_context>
chip_gen: v7x
topology: tpu7x:2x2x1
jax: 0.10.0
libtpu: 0.0.40
codegen_flags: <defaults>
</compile_context>

<pallas_src>
import jax
import jax.numpy as jnp
import numpy as np
from jax.experimental import pallas as pl
from jax.experimental.pallas import tpu as pltpu


def _round_up(x, m):
    return (x + m - 1) // m * m


def recsys_kernel(uidx_ref, midx_ref,                 # scalar prefetch (SMEM)
                  ut_ref, mt_ref,                     # embedding tables (HBM / pl.ANY)
                  w1u_ref, w1m_ref, b1_ref, w2_ref, b2_ref,  # weights (VMEM-resident)
                  o_ref,                              # output tile (TB, 1)
                  ue_buf, me_buf, sem):               # scratch: gather buffers + DMA sems
    TB, EP = ue_buf.shape
    base = pl.program_id(0) * TB

    # ---- fused embedding gather: one row DMA per lookup, HBM -> VMEM -------
    @pl.loop(0, TB)
    def _issue(r):
        u = uidx_ref[base + r]
        m = midx_ref[base + r]
        pltpu.make_async_copy(ut_ref.at[pl.ds(u, 1)], ue_buf.at[pl.ds(r, 1)],
                              sem.at[0]).start()
        pltpu.make_async_copy(mt_ref.at[pl.ds(m, 1)], me_buf.at[pl.ds(r, 1)],
                              sem.at[1]).start()

    @pl.loop(0, TB)
    def _drain(r):
        u = uidx_ref[base + r]
        m = midx_ref[base + r]
        pltpu.make_async_copy(ut_ref.at[pl.ds(u, 1)], ue_buf.at[pl.ds(r, 1)],
                              sem.at[0]).wait()
        pltpu.make_async_copy(mt_ref.at[pl.ds(m, 1)], me_buf.at[pl.ds(r, 1)],
                              sem.at[1]).wait()

    # ---- relu(concat([u_e, m_e])): relu is elementwise, zero-padded cols stay 0
    ue = jnp.maximum(ue_buf[...], 0.0)
    me = jnp.maximum(me_buf[...], 0.0)
    # TODO(synk): nn.Dropout(0.1) is identity in eval mode; training-mode mask
    # (pltpu.prng_seed / prng_random_bits) not implemented.

    # ---- linear1 on the (virtually) concatenated features (two K=128 dots) --
    h = (jnp.dot(ue, w1u_ref[...], preferred_element_type=jnp.float32)
         + jnp.dot(me, w1m_ref[...], preferred_element_type=jnp.float32)
         + b1_ref[...])
    h = jnp.maximum(h, 0.0)

    # ---- output head: VPU multiply + lane reduce (no N=1 MXU matmul) --------
    o_ref[...] = jnp.sum(h * w2_ref[...], axis=-1, keepdims=True) + b2_ref[...]


def prepare_params(params, lane=128):
    """One-time weight preprocessing, hoisted out of the per-call path."""
    user_table, movie_table, w1, b1, w2, b2 = params
    E = user_table.shape[1]
    H = w1.shape[0]
    EP = _round_up(E, lane)                 # pad embedding dim to lane width
    nu = _round_up(user_table.shape[0], 8)
    nm = _round_up(movie_table.shape[0], 8)

    ut = jnp.zeros((nu, EP), jnp.float32).at[:user_table.shape[0], :E].set(user_table)
    mt = jnp.zeros((nm, EP), jnp.float32).at[:movie_table.shape[0], :E].set(movie_table)
    # Split W1 (H, 2E) into user/movie halves, transpose for x @ W.T, pad K to EP.
    w1u = jnp.zeros((EP, H), jnp.float32).at[:E, :].set(w1[:, :E].T)
    w1m = jnp.zeros((EP, H), jnp.float32).at[:E, :].set(w1[:, E:].T)
    b1r = jnp.asarray(b1, jnp.float32).reshape(1, H)
    w2r = jnp.asarray(w2, jnp.float32).reshape(1, H)
    b2r = jnp.asarray(b2, jnp.float32).reshape(1, 1)
    return (ut, mt, w1u, w1m, b1r, w2r, b2r)


def recsys_forward(user, movie, prepared, *, tile_rows=512):
    """Tiled, pipelined forward pass with in-kernel embedding gather."""
    ut, mt, w1u, w1m, b1r, w2r, b2r = prepared
    EP = ut.shape[1]
    H = w1u.shape[1]
    B = user.shape[0]

    TB = min(tile_rows, _round_up(B, 8))    # batch tile (rows), multiple of 8
    B_pad = _round_up(B, TB)
    nt = B_pad // TB

    # Pad index vectors; padded rows gather row 0 and are sliced off below.
    uidx = jnp.zeros((B_pad,), jnp.int32).at[:B].set(user.astype(jnp.int32))
    midx = jnp.zeros((B_pad,), jnp.int32).at[:B].set(movie.astype(jnp.int32))

    grid_spec = pltpu.PrefetchScalarGridSpec(
        num_scalar_prefetch=2,
        grid=(nt,),
        in_specs=[
            pl.BlockSpec(memory_space=pl.ANY),             # user table (HBM)
            pl.BlockSpec(memory_space=pl.ANY),             # movie table (HBM)
            pl.BlockSpec((EP, H), lambda i, *_: (0, 0)),   # W1 user half (VMEM-resident)
            pl.BlockSpec((EP, H), lambda i, *_: (0, 0)),   # W1 movie half
            pl.BlockSpec((1, H), lambda i, *_: (0, 0)),    # b1
            pl.BlockSpec((1, H), lambda i, *_: (0, 0)),    # w2 row
            pl.BlockSpec((1, 1), lambda i, *_: (0, 0)),    # b2
        ],
        out_specs=pl.BlockSpec((TB, 1), lambda i, *_: (i, 0)),
        scratch_shapes=[
            pltpu.VMEM((TB, EP), jnp.float32),             # gathered user rows
            pltpu.VMEM((TB, EP), jnp.float32),             # gathered movie rows
            pltpu.SemaphoreType.DMA((2,)),
        ],
    )

    out = pl.pallas_call(
        recsys_kernel,
        out_shape=jax.ShapeDtypeStruct((B_pad, 1), jnp.float32),
        grid_spec=grid_spec,
        compiler_params=pltpu.CompilerParams(
            dimension_semantics=("parallel",),             # megacore batch split on v7x
        ),
    )(uidx, midx, ut, mt, w1u, w1m, b1r, w2r, b2r)
    return out[:B]


def init_params(key, num_users, num_movies, emb_size=100, n_hidden=10):
    ks = jax.random.split(key, 6)
    # nn.Embedding default: N(0, 1)
    user_table = jax.random.normal(ks[0], (num_users, emb_size), jnp.float32)
    movie_table = jax.random.normal(ks[1], (num_movies, emb_size), jnp.float32)
    # nn.Linear default: U(-1/sqrt(fan_in), 1/sqrt(fan_in))
    lim1 = 1.0 / np.sqrt(emb_size * 2)
    w1 = jax.random.uniform(ks[2], (n_hidden, emb_size * 2), jnp.float32, -lim1, lim1)
    b1 = jax.random.uniform(ks[3], (n_hidden,), jnp.float32, -lim1, lim1)
    lim2 = 1.0 / np.sqrt(n_hidden)
    w2 = jax.random.uniform(ks[4], (1, n_hidden), jnp.float32, -lim2, lim2)
    b2 = jax.random.uniform(ks[5], (1,), jnp.float32, -lim2, lim2)
    return (user_table, movie_table, w1, b1, w2, b2)


def recsys_reference(user, movie, params):
    user_table, movie_table, w1, b1, w2, b2 = params
    ue = user_table[user]
    me = movie_table[movie]
    h = jax.nn.relu(jnp.concatenate([ue, me], axis=1))
    h = jax.nn.relu(h @ w1.T + b1)
    return h @ w2.T + b2


if __name__ == "__main__":
    num_users, num_movies = 50, 60
    emb_size, n_hidden = 100, 10
    batch = 8

    key = jax.random.PRNGKey(0)
    kp, ku, km = jax.random.split(key, 3)
    params = init_params(kp, num_users, num_movies, emb_size, n_hidden)
    prepared = prepare_params(params)          # one-time weight prep (hoisted)

    user = jax.random.randint(ku, (batch,), 0, num_users, dtype=jnp.int32)
    movie = jax.random.randint(km, (batch,), 0, num_movies, dtype=jnp.int32)

    out = recsys_forward(user, movie, prepared)
    out = jax.block_until_ready(out)

    ref = recsys_reference(user, movie, params)
    np.testing.assert_allclose(np.asarray(out), np.asarray(ref), rtol=1e-5, atol=1e-5)

    print("KERNEL_OK")
</pallas_src>

<mosaic_0001>
module attributes {stable_mosaic.version = 11 : i64} {
  func.func @recsys_kernel(%arg0: i32, %arg1: memref<8xi32, #tpu.memory_space<smem>>, %arg2: memref<8xi32, #tpu.memory_space<smem>>, %arg3: memref<56x128xf32, #tpu.memory_space<any>>, %arg4: memref<64x128xf32, #tpu.memory_space<any>>, %arg5: memref<128x10xf32, #tpu.memory_space<vmem>>, %arg6: memref<128x10xf32, #tpu.memory_space<vmem>>, %arg7: memref<1x10xf32, #tpu.memory_space<vmem>>, %arg8: memref<1x10xf32, #tpu.memory_space<vmem>>, %arg9: memref<1x1xf32, #tpu.memory_space<vmem>>, %arg10: memref<8x1xf32, #tpu.memory_space<vmem>>, %arg11: memref<8x128xf32, #tpu.memory_space<vmem>>, %arg12: memref<8x128xf32, #tpu.memory_space<vmem>>, %arg13: memref<2x!tpu.dma_semaphore, #tpu.memory_space<semaphore_mem>>) attributes {dimension_semantics = [#tpu.dimension_semantics<parallel>], iteration_bounds = array<i64: 1>, scalar_prefetch = 2 : i64, scratch_operands = 3 : i64, tpu.core_type = #tpu.core_type<tc>, window_params = [{}, {}, {pipeline_mode = #tpu.pipeline_mode<synchronous>, transform_indices = @transform_2, window_bounds = array<i64: 128, 10>}, {pipeline_mode = #tpu.pipeline_mode<synchronous>, transform_indices = @transform_3, window_bounds = array<i64: 128, 10>}, {pipeline_mode = #tpu.pipeline_mode<synchronous>, transform_indices = @transform_4, window_bounds = array<i64: 1, 10>}, {pipeline_mode = #tpu.pipeline_mode<synchronous>, transform_indices = @transform_5, window_bounds = array<i64: 1, 10>}, {pipeline_mode = #tpu.pipeline_mode<synchronous>, transform_indices = @transform_6, window_bounds = array<i64: 1, 1>}, {transform_indices = @transform_7, window_bounds = array<i64: 8, 1>}]} {
    %c8_i32 = arith.constant 8 : i32
    %0 = arith.muli %arg0, %c8_i32 : i32
    %c0_i32 = arith.constant 0 : i32
    %c8_i32_0 = arith.constant 8 : i32
    %1 = arith.addi %c0_i32, %c8_i32_0 : i32
    %c1_i32 = arith.constant 1 : i32
    scf.for %arg14 = %c0_i32 to %1 step %c1_i32  : i32 {
      %c1_i32_26 = arith.constant 1 : i32
      %28 = arith.muli %arg14, %c1_i32_26 : i32
      %c0_i32_27 = arith.constant 0 : i32
      %29 = arith.addi %c0_i32_27, %28 : i32
      %30 = arith.addi %0, %29 : i32
      %31 = arith.index_cast %30 : i32 to index
      %32 = memref.load %arg1[%31] : memref<8xi32, #tpu.memory_space<smem>>
      %33 = arith.addi %0, %29 : i32
      %34 = arith.index_cast %33 : i32 to index
      %35 = memref.load %arg2[%34] : memref<8xi32, #tpu.memory_space<smem>>
      %c0_i32_28 = arith.constant 0 : i32
      %c0_i32_29 = arith.constant 0 : i32
      %36 = tpu.memref_slice %arg3[%32, %c0_i32_29] : memref<56x128xf32, #tpu.memory_space<any>> -> memref<1x128xf32, #tpu.memory_space<any>>
      %c0_i32_30 = arith.constant 0 : i32
      %37 = tpu.memref_slice %arg11[%29, %c0_i32_30] : memref<8x128xf32, #tpu.memory_space<vmem>> -> memref<1x128xf32, #tpu.memory_space<vmem>>
      %38 = tpu.memref_slice %arg13[%c0_i32_28] : memref<2x!tpu.dma_semaphore, #tpu.memory_space<semaphore_mem>> -> memref<1x!tpu.dma_semaphore, #tpu.memory_space<semaphore_mem>>
      %39 = tpu.memref_squeeze %38 : memref<1x!tpu.dma_semaphore, #tpu.memory_space<semaphore_mem>> -> memref<!tpu.dma_semaphore, #tpu.memory_space<semaphore_mem>>
      tpu.enqueue_dma source(%36 : memref<1x128xf32, #tpu.memory_space<any>>) target(%37 : memref<1x128xf32, #tpu.memory_space<vmem>>) target_semaphore(%39 : memref<!tpu.dma_semaphore, #tpu.memory_space<semaphore_mem>>)
      %c1_i32_31 = arith.constant 1 : i32
      %c0_i32_32 = arith.constant 0 : i32
      %40 = tpu.memref_slice %arg4[%35, %c0_i32_32] : memref<64x128xf32, #tpu.memory_space<any>> -> memref<1x128xf32, #tpu.memory_space<any>>
      %c0_i32_33 = arith.constant 0 : i32
      %41 = tpu.memref_slice %arg12[%29, %c0_i32_33] : memref<8x128xf32, #tpu.memory_space<vmem>> -> memref<1x128xf32, #tpu.memory_space<vmem>>
      %42 = tpu.memref_slice %arg13[%c1_i32_31] : memref<2x!tpu.dma_semaphore, #tpu.memory_space<semaphore_mem>> -> memref<1x!tpu.dma_semaphore, #tpu.memory_space<semaphore_mem>>
      %43 = tpu.memref_squeeze %42 : memref<1x!tpu.dma_semaphore, #tpu.memory_space<semaphore_mem>> -> memref<!tpu.dma_semaphore, #tpu.memory_space<semaphore_mem>>
      tpu.enqueue_dma source(%40 : memref<1x128xf32, #tpu.memory_space<any>>) target(%41 : memref<1x128xf32, #tpu.memory_space<vmem>>) target_semaphore(%43 : memref<!tpu.dma_semaphore, #tpu.memory_space<semaphore_mem>>)
    }
    %c8_i32_1 = arith.constant 8 : i32
    %c0_i32_2 = arith.constant 0 : i32
    %c8_i32_3 = arith.constant 8 : i32
    %2 = arith.addi %c0_i32_2, %c8_i32_3 : i32
    %c1_i32_4 = arith.constant 1 : i32
    scf.for %arg14 = %c0_i32_2 to %2 step %c1_i32_4  : i32 {
      %c1_i32_26 = arith.constant 1 : i32
      %28 = arith.muli %arg14, %c1_i32_26 : i32
      %c0_i32_27 = arith.constant 0 : i32
      %29 = arith.addi %c0_i32_27, %28 : i32
      %30 = arith.addi %0, %29 : i32
      %31 = arith.index_cast %30 : i32 to index
      %32 = memref.load %arg1[%31] : memref<8xi32, #tpu.memory_space<smem>>
      %33 = arith.addi %0, %29 : i32
      %34 = arith.index_cast %33 : i32 to index
      %35 = memref.load %arg2[%34] : memref<8xi32, #tpu.memory_space<smem>>
      %c0_i32_28 = arith.constant 0 : i32
      %c0_i32_29 = arith.constant 0 : i32
      %36 = tpu.memref_slice %arg3[%32, %c0_i32_29] : memref<56x128xf32, #tpu.memory_space<any>> -> memref<1x128xf32, #tpu.memory_space<any>>
      %c0_i32_30 = arith.constant 0 : i32
      %37 = tpu.memref_slice %arg11[%29, %c0_i32_30] : memref<8x128xf32, #tpu.memory_space<vmem>> -> memref<1x128xf32, #tpu.memory_space<vmem>>
      %38 = tpu.memref_slice %arg13[%c0_i32_28] : memref<2x!tpu.dma_semaphore, #tpu.memory_space<semaphore_mem>> -> memref<1x!tpu.dma_semaphore, #tpu.memory_space<semaphore_mem>>
      %39 = tpu.memref_squeeze %38 : memref<1x!tpu.dma_semaphore, #tpu.memory_space<semaphore_mem>> -> memref<!tpu.dma_semaphore, #tpu.memory_space<semaphore_mem>>
      tpu.wait_dma2 semaphore(%39 : memref<!tpu.dma_semaphore, #tpu.memory_space<semaphore_mem>>) src(%36 : memref<1x128xf32, #tpu.memory_space<any>>) dst(%37 : memref<1x128xf32, #tpu.memory_space<vmem>>)
      %c1_i32_31 = arith.constant 1 : i32
      %c0_i32_32 = arith.constant 0 : i32
      %40 = tpu.memref_slice %arg4[%35, %c0_i32_32] : memref<64x128xf32, #tpu.memory_space<any>> -> memref<1x128xf32, #tpu.memory_space<any>>
      %c0_i32_33 = arith.constant 0 : i32
      %41 = tpu.memref_slice %arg12[%29, %c0_i32_33] : memref<8x128xf32, #tpu.memory_space<vmem>> -> memref<1x128xf32, #tpu.memory_space<vmem>>
      %42 = tpu.memref_slice %arg13[%c1_i32_31] : memref<2x!tpu.dma_semaphore, #tpu.memory_space<semaphore_mem>> -> memref<1x!tpu.dma_semaphore, #tpu.memory_space<semaphore_mem>>
      %43 = tpu.memref_squeeze %42 : memref<1x!tpu.dma_semaphore, #tpu.memory_space<semaphore_mem>> -> memref<!tpu.dma_semaphore, #tpu.memory_space<semaphore_mem>>
      tpu.wait_dma2 semaphore(%43 : memref<!tpu.dma_semaphore, #tpu.memory_space<semaphore_mem>>) src(%40 : memref<1x128xf32, #tpu.memory_space<any>>) dst(%41 : memref<1x128xf32, #tpu.memory_space<vmem>>)
    }
    %c8_i32_5 = arith.constant 8 : i32
    %c0 = arith.constant 0 : index
    %c0_6 = arith.constant 0 : index
    %3 = vector.load %arg11[%c0, %c0_6] : memref<8x128xf32, #tpu.memory_space<vmem>>, vector<8x128xf32>
    %cst = arith.constant 0.000000e+00 : f32
    %4 = vector.broadcast %cst : f32 to vector<8x128xf32>
    %5 = arith.maximumf %3, %4 : vector<8x128xf32>
    %c0_7 = arith.constant 0 : index
    %c0_8 = arith.constant 0 : index
    %6 = vector.load %arg12[%c0_7, %c0_8] : memref<8x128xf32, #tpu.memory_space<vmem>>, vector<8x128xf32>
    %cst_9 = arith.constant 0.000000e+00 : f32
    %7 = vector.broadcast %cst_9 : f32 to vector<8x128xf32>
    %8 = arith.maximumf %6, %7 : vector<8x128xf32>
    %c0_10 = arith.constant 0 : index
    %c0_11 = arith.constant 0 : index
    %9 = vector.load %arg5[%c0_10, %c0_11] : memref<128x10xf32, #tpu.memory_space<vmem>>, vector<128x10xf32>
    %cst_12 = arith.constant dense<0.000000e+00> : vector<8x10xf32>
    %10 = tpu.matmul %5, %9, %cst_12 {dimension_numbers = #tpu.dot_dimension_numbers<[1], [0], [0], [1], [0, 0, 1, 1], [], []>} : vector<8x128xf32>, vector<128x10xf32>, vector<8x10xf32> -> vector<8x10xf32>
    %c0_13 = arith.constant 0 : index
    %c0_14 = arith.constant 0 : index
    %11 = vector.load %arg6[%c0_13, %c0_14] : memref<128x10xf32, #tpu.memory_space<vmem>>, vector<128x10xf32>
    %cst_15 = arith.constant dense<0.000000e+00> : vector<8x10xf32>
    %12 = tpu.matmul %8, %11, %cst_15 {dimension_numbers = #tpu.dot_dimension_numbers<[1], [0], [0], [1], [0, 0, 1, 1], [], []>} : vector<8x128xf32>, vector<128x10xf32>, vector<8x10xf32> -> vector<8x10xf32>
    %13 = arith.addf %10, %12 : vector<8x10xf32>
    %c0_16 = arith.constant 0 : index
    %c0_17 = arith.constant 0 : index
    %14 = vector.load %arg7[%c0_16, %c0_17] : memref<1x10xf32, #tpu.memory_space<vmem>>, vector<1x10xf32>
    %15 = vector.broadcast %14 : vector<1x10xf32> to vector<8x10xf32>
    %16 = arith.addf %13, %15 : vector<8x10xf32>
    %cst_18 = arith.constant 0.000000e+00 : f32
    %17 = vector.broadcast %cst_18 : f32 to vector<8x10xf32>
    %18 = arith.maximumf %16, %17 : vector<8x10xf32>
    %c0_19 = arith.constant 0 : index
    %c0_20 = arith.constant 0 : index
    %19 = vector.load %arg8[%c0_19, %c0_20] : memref<1x10xf32, #tpu.memory_space<vmem>>, vector<1x10xf32>
    %20 = vector.broadcast %19 : vector<1x10xf32> to vector<8x10xf32>
    %21 = arith.mulf %18, %20 : vector<8x10xf32>
    %cst_21 = arith.constant dense<0.000000e+00> : vector<8xf32>
    %22 = vector.multi_reduction <add>, %21, %cst_21 [1] : vector<8x10xf32> to vector<8xf32>
    %23 = vector.shape_cast %22 : vector<8xf32> to vector<8x1xf32>
    %c0_22 = arith.constant 0 : index
    %c0_23 = arith.constant 0 : index
    %24 = vector.load %arg9[%c0_22, %c0_23] : memref<1x1xf32, #tpu.memory_space<vmem>>, vector<1x1xf32>
    %25 = vector.broadcast %24 : vector<1x1xf32> to vector<8x1xf32>
    %26 = arith.addf %23, %25 : vector<8x1xf32>
    %c0_24 = arith.constant 0 : index
    %c0_25 = arith.constant 0 : index
    %27 = vector.load %arg10[%c0_24, %c0_25] : memref<8x1xf32, #tpu.memory_space<vmem>>, vector<8x1xf32>
    tpu.vector_store %arg10[%c0_24, %c0_25], %26 {strides = array<i32>} : memref<8x1xf32, #tpu.memory_space<vmem>>, vector<8x1xf32>,
    return
  }
  func.func @transform_2(%arg0: i32, %arg1: memref<8xi32, #tpu.memory_space<smem>>, %arg2: memref<8xi32, #tpu.memory_space<smem>>) -> (i32, i32) {
    %c0_i32 = arith.constant 0 : i32
    %c0_i32_0 = arith.constant 0 : i32
    %c0_i32_1 = arith.constant 0 : i32
    return %c0_i32, %c0_i32_0 : i32, i32
  }
  func.func @transform_3(%arg0: i32, %arg1: memref<8xi32, #tpu.memory_space<smem>>, %arg2: memref<8xi32, #tpu.memory_space<smem>>) -> (i32, i32) {
    %c0_i32 = arith.constant 0 : i32
    %c0_i32_0 = arith.constant 0 : i32
    %c0_i32_1 = arith.constant 0 : i32
    return %c0_i32, %c0_i32_0 : i32, i32
  }
  func.func @transform_4(%arg0: i32, %arg1: memref<8xi32, #tpu.memory_space<smem>>, %arg2: memref<8xi32, #tpu.memory_space<smem>>) -> (i32, i32) {
    %c0_i32 = arith.constant 0 : i32
    %c0_i32_0 = arith.constant 0 : i32
    %c0_i32_1 = arith.constant 0 : i32
    return %c0_i32, %c0_i32_0 : i32, i32
  }
  func.func @transform_5(%arg0: i32, %arg1: memref<8xi32, #tpu.memory_space<smem>>, %arg2: memref<8xi32, #tpu.memory_space<smem>>) -> (i32, i32) {
    %c0_i32 = arith.constant 0 : i32
    %c0_i32_0 = arith.constant 0 : i32
    %c0_i32_1 = arith.constant 0 : i32
    return %c0_i32, %c0_i32_0 : i32, i32
  }
  func.func @transform_6(%arg0: i32, %arg1: memref<8xi32, #tpu.memory_space<smem>>, %arg2: memref<8xi32, #tpu.memory_space<smem>>) -> (i32, i32) {
    %c0_i32 = arith.constant 0 : i32
    %c0_i32_0 = arith.constant 0 : i32
    %c0_i32_1 = arith.constant 0 : i32
    return %c0_i32, %c0_i32_0 : i32, i32
  }
  func.func @transform_7(%arg0: i32, %arg1: memref<8xi32, #tpu.memory_space<smem>>, %arg2: memref<8xi32, #tpu.memory_space<smem>>) -> (i32, i32) {
    %c0_i32 = arith.constant 0 : i32
    %c0_i32_0 = arith.constant 0 : i32
    return %arg0, %c0_i32 : i32, i32
  }
}

</mosaic_0001>

<llo_original>
// kernel: tpu_custom_call.1
$region0: #{tpu_custom_call.1}
  #allocation0 [shape = 'u32[]', space=smem, size = 0x4, offset = 0x4, fixed_abs, tag = 'smem constant byte address 0x4 - core index']
  #allocation1 [shape = 'u32[144,128]{1,0:T(1,128)}', space=vmem, size = 0x12000, scoped, tag = 'internal scratch']
  #allocation2 [shape = 'f32[8,128]{1,0:T(8,128)}', space=vmem, size = 0x1000, scoped, tag = 'scratch operand']
  #allocation3 [shape = 'f32[8,128]{1,0:T(8,128)}', space=vmem, size = 0x1000, scoped, tag = 'scratch operand']
  #allocation4 [shape = 's32[2]{0}', space=sflag, size = 0x8, scoped, tag = 'scratch operand']
  #allocation5 [shape = 's32[1]{0}', space=sflag, size = 0x4, scoped, tag = 'scoped memory for tpu_custom_call.1']
  #allocation6 [shape = 'u8[512]{0}', space=smem, size = 0x200, scoped, tag = 'prefetched SMEM operand 0']
  #allocation7 [shape = 'u8[512]{0}', space=smem, size = 0x200, scoped, tag = 'prefetched SMEM operand 1']
  #allocation8 [shape = 'f32[1,1]{1,0:T(1,128)S(1)}', space=vmem, size = 0x200, scoped, tag = 'scoped memory for tpu_custom_call.1']
  #allocation9 [shape = 's32[]', space=sflag, size = 0x4, offset = 0, fixed_abs, tag = 'sflag constant byte address 0x0 - dummy sync flag']
  #allocation10 [shape = 's32[]', space=sflag, size = 0x4, offset = 0, fixed_abs, tag = 'sflag constant byte address 0x0 - dummy sync flag']
  %s0 = inlined_call_operand.vmem [shape: s32[8], index: 0, kind: input, shape index: {}]
  %s1 = inlined_call_operand.vmem [shape: s32[8], index: 1, kind: input, shape index: {}]
  %s2 = inlined_call_operand.vmem [shape: f32[56,128], index: 2, kind: input, shape index: {}]
  %s3 = inlined_call_operand.vmem [shape: f32[64,128], index: 3, kind: input, shape index: {}]
  %s4 = inlined_call_operand.vmem [shape: f32[128,10], index: 4, kind: input, shape index: {}]
  %s5 = inlined_call_operand.vmem [shape: f32[128,10], index: 5, kind: input, shape index: {}]
  %s6 = inlined_call_operand.vmem [shape: f32[1,10], index: 6, kind: input, shape index: {}]
  %s7 = inlined_call_operand.vmem [shape: f32[1,10], index: 7, kind: input, shape index: {}]
  %s8 = inlined_call_operand.<no memory space> [shape: f32[1,1], index: 8, kind: input, shape index: {}]
  %s9 = inlined_call_operand.vmem [shape: f32[8,1], index: 9, kind: output, shape index: {}]
  %s10 = sld [smem:[#allocation0]]
  $region104: #{tpu_custom_call.1} parent=0
    _
  %s12 = ssub.s32 1, %s10
  %s13 = scalar_select 0, %s12, %s10
  %s14 = sshll.u32 %s0, 4
  %s15 = int_to_ptr.vmem [resolvable:$true] %s14
  %17 = dma.vmem_to_smem %s15, 16, [#allocation6], [#allocation5]
  %s18 = sshll.u32 %s1, 4
  %s19 = int_to_ptr.vmem [resolvable:$true] %s18
  %21 = dma.vmem_to_smem %s19, 16, [#allocation7], [#allocation5]
  %v22 = vstv %s8
  %23 = vst [vmem:[#allocation8] sm:$0x1] %v22
  %24 = dma.done [#allocation5], 32
  %25 = sfence
  // Predicated region
  $region2: #{tpu_custom_call.1} parent=0 // pred_check
    _
  $region3: #{tpu_custom_call.1} parent=0 // pred_check_branch
    %27 = sbr.rel (0) target = $region5
  $region4: #{tpu_custom_call.1} parent=0 // pred_region
    _
  $region5: #{tpu_custom_call.1} parent=0 // pred_fallthru
    _
  // Predicated region
  $region6: #{tpu_custom_call.1} parent=0 // pred_check
    _
  $region7: #{tpu_custom_call.1} parent=0 // pred_check_branch
    %29 = sbr.rel (0) target = $region9
  $region8: #{tpu_custom_call.1} parent=0 // pred_region
    _
  $region9: #{tpu_custom_call.1} parent=0 // pred_fallthru
    _
  // Predicated region
  $region10: #{tpu_custom_call.1} parent=0 // pred_check
    _
  $region11: #{tpu_custom_call.1} parent=0 // pred_check_branch
    %31 = sbr.rel (0) target = $region13
  $region12: #{tpu_custom_call.1} parent=0 // pred_region
    _
  $region13: #{tpu_custom_call.1} parent=0 // pred_fallthru
    _
  // Predicated region
  $region14: #{tpu_custom_call.1} parent=0 // pred_check
    _
  $region15: #{tpu_custom_call.1} parent=0 // pred_check_branch
    %33 = sbr.rel (0) target = $region17
  $region16: #{tpu_custom_call.1} parent=0 // pred_region
    _
  $region17: #{tpu_custom_call.1} parent=0 // pred_fallthru
    _
  // Predicated region
  $region18: #{tpu_custom_call.1} parent=0 // pred_check
    _
  $region19: #{tpu_custom_call.1} parent=0 // pred_check_branch
    %35 = sbr.rel (0) target = $region21
  $region20: #{tpu_custom_call.1} parent=0 // pred_region
    _
  $region21: #{tpu_custom_call.1} parent=0 // pred_fallthru
    _
  %s36 = smul.u32 0, 8
  loop: start=0, step=1, limit=8
  $region22: #{tpu_custom_call.1} parent=0 // loop_pre_header
    _
  $region23: #{tpu_custom_call.1} parent=0 // loop_header
    %s38 = sphi 0, %s42
    %p39 = scmp.ge.s32.totalorder %s38, 8
  $region24: #{tpu_custom_call.1} parent=0 // loop_header_branch
    %41 = sbr.rel (%p39) target = $region28
  $region25: #{tpu_custom_call.1} parent=0 // loop_body
    %s43 = sadd.s32 %s36, %s38
    %s44 = sld [smem:[#allocation6 + %s43]]
    %s45 = sld [smem:[#allocation7 + %s43]]
    %s46 = scalar_lea.vmem %s2, %s44
    %s47 = scalar_lea.vmem [#allocation2], %s38
    %p49 = scmp.lt.u32.totalorder 1, 8
    %p50 = pneg %p49
    // Predicated region
    $region29: #{tpu_custom_call.1} parent=25 // pred_check
      _
    $region30: #{tpu_custom_call.1} parent=25 // pred_check_branch
      %52 = sbr.rel (%p49) target = $region32
    $region31: #{tpu_custom_call.1} parent=25 // pred_region
      %s67 = sand.u32 1, 7
      %p68 = scmp.eq.s32.totalorder %s67, 0
      %p69 = pneg %p68
      // Predicated region
      $region44: #{tpu_custom_call.1} parent=31 // pred_check
        _
      $region45: #{tpu_custom_call.1} parent=31 // pred_check_branch
        %71 = sbr.rel (%p68) target = $region47
      $region46: #{tpu_custom_call.1} parent=31 // pred_region
        %s72 = sand.u32 1, 7
        %s73 = ssub.s32 1, %s72
        %s74 = scalar_lea.vmem %s46, %s73
        %s75 = ssub.s32 1, %s72
        %s76 = scalar_lea.vmem %s47, %s75 [#allocation2]
        %s77 = sshllo.u32 0, %s72
        loop: start=0, step=1, limit=1
        $region48: #{tpu_custom_call.1} parent=46 // loop_pre_header
          _
        $region49: #{tpu_custom_call.1} parent=46 // loop_header
          %s79 = sphi 0, %s83
          %p80 = scmp.ge.s32.totalorder %s79, 1
          %s84 = sphi %s74, %s74
          %s85 = sphi %s76, %s76
        $region50: #{tpu_custom_call.1} parent=46 // loop_header_branch
          %82 = sbr.rel (%p80) target = $region54
        $region51: #{tpu_custom_call.1} parent=46 // loop_body
          %v86 = vld [vmem:[%s84] sm:%s77]
          %87 = vst [vmem:[%s85] sm:%s77] %v86
        $region52: #{tpu_custom_call.1} parent=46 // loop_footer
          %s83 = sadd.s32 1, %s79
        $region53: #{tpu_custom_call.1} parent=46 // loop_footer_branch
          %78 = sbr.rel target = $region49
        $region54: #{tpu_custom_call.1} parent=46 // loop_exit
          _
      $region47: #{tpu_custom_call.1} parent=31 // pred_fallthru
        _
    $region32: #{tpu_custom_call.1} parent=25 // pred_fallthru
      _
    // Predicated region
    $region33: #{tpu_custom_call.1} parent=25 // pred_check
      %p53 = pneg %p49
    $region34: #{tpu_custom_call.1} parent=25 // pred_check_branch
      %55 = sbr.rel (%p53) target = $region36
    $region35: #{tpu_custom_call.1} parent=25 // pred_region
      %s56 = sshllo.u32 0, 1
      loop: start=0, step=1, limit=1
      $region37: #{tpu_custom_call.1} parent=35 // loop_pre_header
        _
      $region38: #{tpu_custom_call.1} parent=35 // loop_header
        %s58 = sphi 0, %s62
        %p59 = scmp.ge.s32.totalorder %s58, 1
        %s63 = sphi %s46, %s46
        %s64 = sphi %s47, %s47
      $region39: #{tpu_custom_call.1} parent=35 // loop_header_branch
        %61 = sbr.rel (%p59) target = $region43
      $region40: #{tpu_custom_call.1} parent=35 // loop_body
        %v65 = vld [vmem:[%s63] sm:%s56]
        %66 = vst [vmem:[%s64] sm:%s56] %v65
      $region41: #{tpu_custom_call.1} parent=35 // loop_footer
        %s62 = sadd.s32 1, %s58
      $region42: #{tpu_custom_call.1} parent=35 // loop_footer_branch
        %57 = sbr.rel target = $region38
      $region43: #{tpu_custom_call.1} parent=35 // loop_exit
        _
    $region36: #{tpu_custom_call.1} parent=25 // pred_fallthru
      _
    // Predicated region
    $region55: #{tpu_custom_call.1} parent=25 // pred_check
      _
    $region56: #{tpu_custom_call.1} parent=25 // pred_check_branch
      %90 = sbr.rel (0) target = $region58
    $region57: #{tpu_custom_call.1} parent=25 // pred_region
      %91 = vsyncadd [#allocation4], 16
    $region58: #{tpu_custom_call.1} parent=25 // pred_fallthru
      _
    %s92 = scalar_lea.vmem %s3, %s45
    %s93 = scalar_lea.vmem [#allocation3], %s38
    %s94 = scalar_lea.sflag [#allocation4], 1
    %p96 = scmp.lt.u32.totalorder 1, 8
    %p97 = pneg %p96
    // Predicated region
    $region59: #{tpu_custom_call.1} parent=25 // pred_check
      _
    $region60: #{tpu_custom_call.1} parent=25 // pred_check_branch
      %99 = sbr.rel (%p96) target = $region62
    $region61: #{tpu_custom_call.1} parent=25 // pred_region
      %s114 = sand.u32 1, 7
      %p115 = scmp.eq.s32.totalorder %s114, 0
      %p116 = pneg %p115
      // Predicated region
      $region74: #{tpu_custom_call.1} parent=61 // pred_check
        _
      $region75: #{tpu_custom_call.1} parent=61 // pred_check_branch
        %118 = sbr.rel (%p115) target = $region77
      $region76: #{tpu_custom_call.1} parent=61 // pred_region
        %s119 = sand.u32 1, 7
        %s120 = ssub.s32 1, %s119
        %s121 = scalar_lea.vmem %s92, %s120
        %s122 = ssub.s32 1, %s119
        %s123 = scalar_lea.vmem %s93, %s122 [#allocation3]
        %s124 = sshllo.u32 0, %s119
        loop: start=0, step=1, limit=1
        $region78: #{tpu_custom_call.1} parent=76 // loop_pre_header
          _
        $region79: #{tpu_custom_call.1} parent=76 // loop_header
          %s126 = sphi 0, %s130
          %p127 = scmp.ge.s32.totalorder %s126, 1
          %s131 = sphi %s121, %s121
          %s132 = sphi %s123, %s123
        $region80: #{tpu_custom_call.1} parent=76 // loop_header_branch
          %129 = sbr.rel (%p127) target = $region84
        $region81: #{tpu_custom_call.1} parent=76 // loop_body
          %v133 = vld [vmem:[%s131] sm:%s124]
          %134 = vst [vmem:[%s132] sm:%s124] %v133
        $region82: #{tpu_custom_call.1} parent=76 // loop_footer
          %s130 = sadd.s32 1, %s126
        $region83: #{tpu_custom_call.1} parent=76 // loop_footer_branch
          %125 = sbr.rel target = $region79
        $region84: #{tpu_custom_call.1} parent=76 // loop_exit
          _
      $region77: #{tpu_custom_call.1} parent=61 // pred_fallthru
        _
    $region62: #{tpu_custom_call.1} parent=25 // pred_fallthru
      _
    // Predicated region
    $region63: #{tpu_custom_call.1} parent=25 // pred_check
      %p100 = pneg %p96
    $region64: #{tpu_custom_call.1} parent=25 // pred_check_branch
      %102 = sbr.rel (%p100) target = $region66
    $region65: #{tpu_custom_call.1} parent=25 // pred_region
      %s103 = sshllo.u32 0, 1
      loop: start=0, step=1, limit=1
      $region67: #{tpu_custom_call.1} parent=65 // loop_pre_header
        _
      $region68: #{tpu_custom_call.1} parent=65 // loop_header
        %s105 = sphi 0, %s109
        %p106 = scmp.ge.s32.totalorder %s105, 1
        %s110 = sphi %s92, %s92
        %s111 = sphi %s93, %s93
      $region69: #{tpu_custom_call.1} parent=65 // loop_header_branch
        %108 = sbr.rel (%p106) target = $region73
      $region70: #{tpu_custom_call.1} parent=65 // loop_body
        %v112 = vld [vmem:[%s110] sm:%s103]
        %113 = vst [vmem:[%s111] sm:%s103] %v112
      $region71: #{tpu_custom_call.1} parent=65 // loop_footer
        %s109 = sadd.s32 1, %s105
      $region72: #{tpu_custom_call.1} parent=65 // loop_footer_branch
        %104 = sbr.rel target = $region68
      $region73: #{tpu_custom_call.1} parent=65 // loop_exit
        _
    $region66: #{tpu_custom_call.1} parent=25 // pred_fallthru
      _
    // Predicated region
    $region85: #{tpu_custom_call.1} parent=25 // pred_check
      _
    $region86: #{tpu_custom_call.1} parent=25 // pred_check_branch
      %137 = sbr.rel (0) target = $region88
    $region87: #{tpu_custom_call.1} parent=25 // pred_region
      %138 = vsyncadd %s94, 16
    $region88: #{tpu_custom_call.1} parent=25 // pred_fallthru
      _
  $region26: #{tpu_custom_call.1} parent=0 // loop_footer
    %s42 = sadd.s32 1, %s38
  $region27: #{tpu_custom_call.1} parent=0 // loop_footer_branch
    %37 = sbr.rel target = $region23
  $region28: #{tpu_custom_call.1} parent=0 // loop_exit
    _
  loop: start=0, step=1, limit=8
  $region89: #{tpu_custom_call.1} parent=0 // loop_pre_header
    _
  $region90: #{tpu_custom_call.1} parent=0 // loop_header
    %s140 = sphi 0, %s144
    %p141 = scmp.ge.s32.totalorder %s140, 8
  $region91: #{tpu_custom_call.1} parent=0 // loop_header_branch
    %143 = sbr.rel (%p141) target = $region95
  $region92: #{tpu_custom_call.1} parent=0 // loop_body
    %s145 = sadd.s32 %s36, %s140
    %s146 = sld [smem:[#allocation6 + %s145]]
    %s147 = sld [smem:[#allocation7 + %s145]]
    %s148 = smul.u32 1, 1
    %s149 = sshll.u32 %s148, 4
    %150 = dma.done [#allocation4], %s149
    %s151 = scalar_lea.sflag [#allocation4], 1
    %s152 = sshll.u32 %s148, 4
    %153 = dma.done %s151, %s152
  $region93: #{tpu_custom_call.1} parent=0 // loop_footer
    %s144 = sadd.s32 1, %s140
  $region94: #{tpu_custom_call.1} parent=0 // loop_footer_branch
    %139 = sbr.rel target = $region90
  $region95: #{tpu_custom_call.1} parent=0 // loop_exit
    _
  %v154 = vld [vmem:[#allocation2] sm:$0xff]
  %v155 = vmax.f32 %v154, 0.0
  %v156 = vld [vmem:[#allocation3] sm:$0xff]
  %v157 = vmax.f32 %v156, 0.0
  %v158 = vld [vmem:[%s4] sm:$0xff]
  %v159 = vld [vmem:[%s4 + $0x8] sm:$0xff]
  %v160 = vld [vmem:[%s4 + $0x10] sm:$0xff]
  %v161 = vld [vmem:[%s4 + $0x18] sm:$0xff]
  %v162 = vld [vmem:[%s4 + $0x20] sm:$0xff]
  %v163 = vld [vmem:[%s4 + $0x28] sm:$0xff]
  %v164 = vld [vmem:[%s4 + $0x30] sm:$0xff]
  %v165 = vld [vmem:[%s4 + $0x38] sm:$0xff]
  %v166 = vld [vmem:[%s4 + $0x40] sm:$0xff]
  %v167 = vld [vmem:[%s4 + $0x48] sm:$0xff]
  %v168 = vld [vmem:[%s4 + $0x50] sm:$0xff]
  %v169 = vld [vmem:[%s4 + $0x58] sm:$0xff]
  %v170 = vld [vmem:[%s4 + $0x60] sm:$0xff]
  %v171 = vld [vmem:[%s4 + $0x68] sm:$0xff]
  %v172 = vld [vmem:[%s4 + $0x70] sm:$0xff]
  %v173 = vld [vmem:[%s4 + $0x78] sm:$0xff]
  %v174 = vld [vmem:[%s5] sm:$0xff]
  %v175 = vld [vmem:[%s5 + $0x8] sm:$0xff]
  %v176 = vld [vmem:[%s5 + $0x10] sm:$0xff]
  %v177 = vld [vmem:[%s5 + $0x18] sm:$0xff]
  %v178 = vld [vmem:[%s5 + $0x20] sm:$0xff]
  %v179 = vld [vmem:[%s5 + $0x28] sm:$0xff]
  %v180 = vld [vmem:[%s5 + $0x30] sm:$0xff]
  %v181 = vld [vmem:[%s5 + $0x38] sm:$0xff]
  %v182 = vld [vmem:[%s5 + $0x40] sm:$0xff]
  %v183 = vld [vmem:[%s5 + $0x48] sm:$0xff]
  %v184 = vld [vmem:[%s5 + $0x50] sm:$0xff]
  %v185 = vld [vmem:[%s5 + $0x58] sm:$0xff]
  %v186 = vld [vmem:[%s5 + $0x60] sm:$0xff]
  %v187 = vld [vmem:[%s5 + $0x68] sm:$0xff]
  %v188 = vld [vmem:[%s5 + $0x70] sm:$0xff]
  %v189 = vld [vmem:[%s5 + $0x78] sm:$0xff]
  %190 = vmatprep.subr.mxu0 0.0
  %191 = vmatpush1.msra.mxu0 %v174
  %192 = vmatprep.subr.mxu0 0.0
  %193 = vmatpush1.msra.mxu0 %v175
  %194 = vmatprep.subr.mxu0 0.0
  %195 = vmatpush1.msra.mxu0 %v176
  %196 = vmatprep.subr.mxu0 0.0
  %197 = vmatpush1.msra.mxu0 %v177
  %198 = vmatprep.subr.mxu0 0.0
  %199 = vmatpush1.msra.mxu0 %v178
  %200 = vmatprep.subr.mxu0 0.0
  %201 = vmatpush1.msra.mxu0 %v179
  %202 = vmatprep.subr.mxu0 0.0
  %203 = vmatpush1.msra.mxu0 %v180
  %204 = vmatprep.subr.mxu0 0.0
  %205 = vmatpush1.msra.mxu0 %v181
  %206 = vmatprep.subr.mxu0 0.0
  %207 = vmatpush1.msra.mxu0 %v182
  %208 = vmatprep.subr.mxu0 0.0
  %209 = vmatpush1.msra.mxu0 %v183
  %210 = vmatprep.subr.mxu0 0.0
  %211 = vmatpush1.msra.mxu0 %v184
  %212 = vmatprep.subr.mxu0 0.0
  %213 = vmatpush1.msra.mxu0 %v185
  %214 = vmatprep.subr.mxu0 0.0
  %215 = vmatpush1.msra.mxu0 %v186
  %216 = vmatprep.subr.mxu0 0.0
  %217 = vmatpush1.msra.mxu0 %v187
  %218 = vmatprep.subr.mxu0 0.0
  %219 = vmatpush1.msra.mxu0 %v188
  %220 = vmatprep.subr.mxu0 0.0
  %221 = vmatpush1.msra.mxu0 %v189
  %222 = vmatprep.subr.mxu0 0.0
  %223 = vmatpush1.msra.mxu0 0.0
  %224 = vmatprep.subr.mxu0 0.0
  %225 = vmatpush1.msra.mxu0 0.0
  %226 = vmatprep.subr.mxu0 0.0
  %227 = vmatpush1.msra.mxu0 0.0
  %228 = vmatprep.subr.mxu0 0.0
  %229 = vmatpush1.msra.mxu0 0.0
  %230 = vmatprep.subr.mxu0 0.0
  %231 = vmatpush1.msra.mxu0 0.0
  %232 = vmatprep.subr.mxu0 0.0
  %233 = vmatpush1.msra.mxu0 0.0
  %234 = vmatprep.subr.mxu0 0.0
  %235 = vmatpush1.msra.mxu0 0.0
  %236 = vmatprep.subr.mxu0 0.0
  %237 = vmatpush1.msra.mxu0 0.0
  %238 = vmatprep.subr.mxu0 0.0
  %239 = vmatpush1.msra.mxu0 0.0
  %240 = vmatprep.subr.mxu0 0.0
  %241 = vmatpush1.msra.mxu0 0.0
  %242 = vmatprep.subr.mxu0 0.0
  %243 = vmatpush1.msra.mxu0 0.0
  %244 = vmatprep.subr.mxu0 0.0
  %245 = vmatpush1.msra.mxu0 0.0
  %246 = vmatprep.subr.mxu0 0.0
  %247 = vmatpush1.msra.mxu0 0.0
  %248 = vmatprep.subr.mxu0 0.0
  %249 = vmatpush1.msra.mxu0 0.0
  %250 = vmatprep.subr.mxu0 0.0
  %251 = vmatpush1.msra.mxu0 0.0
  %252 = vmatprep.subr.mxu0 0.0
  %253 = vmatpush1.msra.mxu0 0.0
  %254 = vmatprep.mubr.f32.mxu0 0.0
  %255 = vmatmul.mubr.f32.gmra.mrb[0].mxu0 %v157
  %v256 = vpop.f32.mrb[0].mxu0
  %v257 = vadd.f32 0.0, %v256
  %v258 = vpop.f32.mrb[0].mxu0
  %259 = vdwg.mxu0
  %260 = vmatprep.subr.mxu0 0.0
  %261 = vmatpush1.msra.mxu0 %v158
  %262 = vmatprep.subr.mxu0 0.0
  %263 = vmatpush1.msra.mxu0 %v159
  %264 = vmatprep.subr.mxu0 0.0
  %265 = vmatpush1.msra.mxu0 %v160
  %266 = vmatprep.subr.mxu0 0.0
  %267 = vmatpush1.msra.mxu0 %v161
  %268 = vmatprep.subr.mxu0 0.0
  %269 = vmatpush1.msra.mxu0 %v162
  %270 = vmatprep.subr.mxu0 0.0
  %271 = vmatpush1.msra.mxu0 %v163
  %272 = vmatprep.subr.mxu0 0.0
  %273 = vmatpush1.msra.mxu0 %v164
  %274 = vmatprep.subr.mxu0 0.0
  %275 = vmatpush1.msra.mxu0 %v165
  %276 = vmatprep.subr.mxu0 0.0
  %277 = vmatpush1.msra.mxu0 %v166
  %278 = vmatprep.subr.mxu0 0.0
  %279 = vmatpush1.msra.mxu0 %v167
  %280 = vmatprep.subr.mxu0 0.0
  %281 = vmatpush1.msra.mxu0 %v168
  %282 = vmatprep.subr.mxu0 0.0
  %283 = vmatpush1.msra.mxu0 %v169
  %284 = vmatprep.subr.mxu0 0.0
  %285 = vmatpush1.msra.mxu0 %v170
  %286 = vmatprep.subr.mxu0 0.0
  %287 = vmatpush1.msra.mxu0 %v171
  %288 = vmatprep.subr.mxu0 0.0
  %289 = vmatpush1.msra.mxu0 %v172
  %290 = vmatprep.subr.mxu0 0.0
  %291 = vmatpush1.msra.mxu0 %v173
  %292 = vmatprep.subr.mxu0 0.0
  %293 = vmatpush1.msra.mxu0 0.0
  %294 = vmatprep.subr.mxu0 0.0
  %295 = vmatpush1.msra.mxu0 0.0
  %296 = vmatprep.subr.mxu0 0.0
  %297 = vmatpush1.msra.mxu0 0.0
  %298 = vmatprep.subr.mxu0 0.0
  %299 = vmatpush1.msra.mxu0 0.0
  %300 = vmatprep.subr.mxu0 0.0
  %301 = vmatpush1.msra.mxu0 0.0
  %302 = vmatprep.subr.mxu0 0.0
  %303 = vmatpush1.msra.mxu0 0.0
  %304 = vmatprep.subr.mxu0 0.0
  %305 = vmatpush1.msra.mxu0 0.0
  %306 = vmatprep.subr.mxu0 0.0
  %307 = vmatpush1.msra.mxu0 0.0
  %308 = vmatprep.subr.mxu0 0.0
  %309 = vmatpush1.msra.mxu0 0.0
  %310 = vmatprep.subr.mxu0 0.0
  %311 = vmatpush1.msra.mxu0 0.0
  %312 = vmatprep.subr.mxu0 0.0
  %313 = vmatpush1.msra.mxu0 0.0
  %314 = vmatprep.subr.mxu0 0.0
  %315 = vmatpush1.msra.mxu0 0.0
  %316 = vmatprep.subr.mxu0 0.0
  %317 = vmatpush1.msra.mxu0 0.0
  %318 = vmatprep.subr.mxu0 0.0
  %319 = vmatpush1.msra.mxu0 0.0
  %320 = vmatprep.subr.mxu0 0.0
  %321 = vmatpush1.msra.mxu0 0.0
  %322 = vmatprep.subr.mxu0 0.0
  %323 = vmatpush1.msra.mxu0 0.0
  %324 = vmatprep.mubr.f32.mxu0 0.0
  %325 = vmatmul.mubr.f32.gmra.mrb[0].mxu0 %v155
  %v326 = vpop.f32.mrb[0].mxu0
  %v327 = vadd.f32 %v257, %v326
  %v328 = vpop.f32.mrb[0].mxu0
  %329 = vdwg.mxu0
  %v330 = vld [vmem:[%s6] sm:$0x1]
  %v332 = vlaneseq
  %v333 = vshrl.u32 %v332, 7
  %v334 = vsub.s32 0, %v333
  %v335 = vrot.slane %v330, %v334
  %v337 = vadd.f32 %v327, %v335
  %v338 = vmax.f32 %v337, 0.0
  %v339 = vld [vmem:[%s7] sm:$0x1]
  %v341 = vlaneseq
  %v342 = vshrl.u32 %v341, 7
  %v343 = vsub.s32 0, %v342
  %v344 = vrot.slane %v339, %v343
  %v346 = vmul.f32 %v338, %v344
  %vm347 = vcmask 80896
  %v348 = vsel %vm347, %v346, 0.0
  %349 = vadd.xlane.f32.xlu0 %v348
  %v350 = vpop.xlane.xlu0 %349
  %v351 = vld [vmem:[#allocation8] sm:$0x1]
  %v353 = vlaneseq
  %v354 = vshrl.u32 %v353, 7
  %v355 = vsub.s32 0, %v354
  %v356 = vrot.slane %v351, %v355
  %v358 = vadd.f32 %v350, %v356
  %vm359 = vcmask 7168
  %360 = vst.msk [vmem:[%s9] sm:$0xff] %vm359, %v358
  // Predicated region
  $region96: #{tpu_custom_call.1} parent=0 // pred_check
    _
  $region97: #{tpu_custom_call.1} parent=0 // pred_check_branch
    %362 = sbr.rel (0) target = $region99
  $region98: #{tpu_custom_call.1} parent=0 // pred_region
    _
  $region99: #{tpu_custom_call.1} parent=0 // pred_fallthru
    _
  // Predicated region
  $region100: #{tpu_custom_call.1} parent=0 // pred_check
    _
  $region101: #{tpu_custom_call.1} parent=0 // pred_check_branch
    %364 = sbr.rel (0) target = $region103
  $region102: #{tpu_custom_call.1} parent=0 // pred_region
    _
  $region103: #{tpu_custom_call.1} parent=0 // pred_fallthru
    _
  %365 = vsyncmov [#allocation4]
  %s366 = vpop.sfrf %365
  %p367 = scmp.eq.s32.totalorder %s366, 0
  %p368 = pneg %p367
  %370 = shalt.err (%p368)
  %s371 = scalar_lea.sflag [#allocation4], 1
  %372 = vsyncmov %s371
  %s373 = vpop.sfrf %372
  %p374 = scmp.eq.s32.totalorder %s373, 0
  %p375 = pneg %p374
  %377 = shalt.err (%p375)

</llo_original>
